<compile_context>
chip_gen: v6e
topology: v6e:2x2x1
jax: 0.10.0
libtpu: 0.0.40
codegen_flags: <defaults>
</compile_context>

<pallas_src>
import jax
import jax.numpy as jnp
from jax.experimental import pallas as pl
from jax.experimental.pallas import tpu as pltpu


def _identity_copy_kernel(x_ref, o_ref):
    # Pure streaming copy of the current VMEM tile.
    o_ref[...] = x_ref[...]


def _sublane_multiple(dtype) -> int:
    # f32 -> 8, bf16/f16 -> 16, int8/fp8 -> 32 (sub-32-bit packs along sublanes).
    itemsize = jnp.dtype(dtype).itemsize
    return max(8, 32 // max(itemsize, 1))


_LANE_CANDIDATES = (32768, 16384, 8192, 4096, 2048, 1024, 512, 256, 128)
# Arrays at least this large are always split into >=2 grid steps so that
# both v7x TensorCores can stream concurrently on the "parallel" axis.
_MIN_SPLIT_BYTES = 2 * 1024 * 1024


def _block_config():
    """Return (target_block_bytes, vmem_limit_bytes) keyed off TPU generation."""
    try:
        info = pltpu.get_tpu_info()
        name = str(getattr(info, "chip_version", "")).lower()
        if "v5" in name or "5e" in name or "5p" in name or "_5" in name:
            # v5e: ~2 MiB blocks -> 8 MiB live (2 in + 2 out buffers), safely
            # under the 16 MiB default scoped VMEM budget.
            return 2 * 1024 * 1024, 16 * 1024 * 1024
    except Exception:
        pass
    # v6e / v7x (and unknown): ~4 MiB blocks -> 16 MiB live, with an explicit
    # 32 MiB scoped VMEM limit (safe on every generation's physical VMEM).
    return 4 * 1024 * 1024, 32 * 1024 * 1024


def identity(x: jax.Array) -> jax.Array:
    """Identity forward pass: returns x unchanged (zero HBM traffic).

    This is the default and matches torch.nn.Identity semantics exactly for
    every shape and dtype. Use identity_copy() only if a distinct output
    buffer is genuinely required.
    """
    return x


def identity_copy(x: jax.Array) -> jax.Array:
    """Identity that materializes a fresh output buffer via a Pallas copy."""
    orig_shape = x.shape
    n = x.size
    itemsize = jnp.dtype(x.dtype).itemsize

    if n == 0:
        return jnp.zeros(orig_shape, x.dtype)  # fresh (empty) buffer
    if n % 128 != 0:
        # TODO(synk): non-lane-aligned flat sizes fall back to an XLA copy; a
        # Pallas path here would only add masked partial stores for no gain.
        return jnp.copy(x)

    sub = _sublane_multiple(x.dtype)
    target_block_bytes, vmem_limit_bytes = _block_config()

    # Widest lane-dense width that divides the flat size (wide -> fewer DMA
    # descriptors, long unmasked vector loads/stores).
    lane_w = next(w for w in _LANE_CANDIDATES if n % w == 0)
    rows = n // lane_w

    # Rows per block: target the per-generation block size, rounded to the
    # dtype sublane multiple so the (8,128) tiling rule is satisfied.
    block_rows = max(sub, (target_block_bytes // (lane_w * itemsize)) // sub * sub)

    if rows <= block_rows:
        if n * itemsize >= _MIN_SPLIT_BYTES and rows >= 2 * sub:
            # Multi-MiB array: force >=2 "parallel" steps so both v7x
            # TensorCores stream concurrently instead of one single block.
            half = pl.cdiv(rows, 2)
            block_rows = pl.cdiv(half, sub) * sub
        else:
            # Single block covering the whole (rows, lane_w) slab: block dims
            # equal the full array dims, so any row count is legal.
            block_rows = rows

    grid = (pl.cdiv(rows, block_rows),)

    # Free row-major reshape: no padding, no extra HBM traffic.
    x2d = x.reshape(rows, lane_w)

    out2d = pl.pallas_call(
        _identity_copy_kernel,
        out_shape=jax.ShapeDtypeStruct((rows, lane_w), x.dtype),
        grid_spec=pltpu.PrefetchScalarGridSpec(
            num_scalar_prefetch=0,
            grid=grid,
            in_specs=[pl.BlockSpec((block_rows, lane_w), lambda i: (i, 0))],
            out_specs=pl.BlockSpec((block_rows, lane_w), lambda i: (i, 0)),
        ),
        compiler_params=pltpu.CompilerParams(
            # Independent copy tiles: lets v7x shard grid steps over both TCs.
            dimension_semantics=("parallel",),
            vmem_limit_bytes=vmem_limit_bytes,
        ),
        cost_estimate=pl.CostEstimate(
            flops=0, transcendentals=0, bytes_accessed=2 * n * itemsize
        ),
    )(x2d)

    return out2d.reshape(orig_shape)


if __name__ == "__main__":
    key = jax.random.PRNGKey(0)
    x = jax.random.normal(key, (2, 4, 16, 16), dtype=jnp.float32)  # NCHW

    # Default path: true identity, zero HBM traffic (matches nn.Identity).
    y = jax.block_until_ready(identity(x))
    assert y.shape == x.shape
    assert y.dtype == x.dtype
    assert bool(jnp.all(y == x))

    # Pallas path: materialized streaming copy (for callers that genuinely
    # need a fresh output buffer). Exercises the pallas_call once.
    z = jax.block_until_ready(identity_copy(x))
    assert z.shape == x.shape
    assert z.dtype == x.dtype
    assert bool(jnp.all(z == x))

    print("KERNEL_OK")
</pallas_src>

<mosaic_0001>
module attributes {stable_mosaic.version = 11 : i64} {
  func.func @_identity_copy_kernel(%arg0: i32, %arg1: memref<1x2048xf32, #tpu.memory_space<vmem>>, %arg2: memref<1x2048xf32, #tpu.memory_space<vmem>>) attributes {dimension_semantics = [#tpu.dimension_semantics<parallel>], iteration_bounds = array<i64: 1>, scalar_prefetch = 0 : i64, scratch_operands = 0 : i64, tpu.core_type = #tpu.core_type<tc>, window_params = [{transform_indices = @transform_0, window_bounds = array<i64: 1, 2048>}, {transform_indices = @transform_1, window_bounds = array<i64: 1, 2048>}]} {
    %c0 = arith.constant 0 : index
    %c0_0 = arith.constant 0 : index
    %0 = vector.load %arg1[%c0, %c0_0] : memref<1x2048xf32, #tpu.memory_space<vmem>>, vector<1x2048xf32>
    %c0_1 = arith.constant 0 : index
    %c0_2 = arith.constant 0 : index
    %1 = vector.load %arg2[%c0_1, %c0_2] : memref<1x2048xf32, #tpu.memory_space<vmem>>, vector<1x2048xf32>
    tpu.vector_store %arg2[%c0_1, %c0_2], %0 {strides = array<i32>} : memref<1x2048xf32, #tpu.memory_space<vmem>>, vector<1x2048xf32>,
    return
  }
  func.func @transform_0(%arg0: i32) -> (i32, i32) {
    %c0_i32 = arith.constant 0 : i32
    %c0_i32_0 = arith.constant 0 : i32
    return %arg0, %c0_i32 : i32, i32
  }
  func.func @transform_1(%arg0: i32) -> (i32, i32) {
    %c0_i32 = arith.constant 0 : i32
    %c0_i32_0 = arith.constant 0 : i32
    return %arg0, %c0_i32 : i32, i32
  }
}

</mosaic_0001>

<llo_original>
// kernel: tpu_custom_call.1
$region0: #{tpu_custom_call.1}
  #allocation0 [shape = 'u32[]', space=smem, size = 0x4, offset = 0x4, fixed_abs, tag = 'smem constant byte address 0x4 - core index']
  #allocation1 [shape = 'u32[144,128]{1,0:T(1,128)}', space=vmem, size = 0x12000, scoped, tag = 'internal scratch']
  %s0 = inlined_call_operand.hbm [shape: f32[1,2048], index: 0, kind: input, shape index: {}]
  %s1 = inlined_call_operand.hbm [shape: f32[1,2048], index: 1, kind: output, shape index: {}]
  %s2 = sld [smem:[#allocation0]]
  $region18: #{tpu_custom_call.1} parent=0
    _
  %s4 = ssub.s32 1, %s2
  %s5 = scalar_select 0, %s4, %s2
  $region1: #{tpu_custom_call.1} parent=0
    #allocation2 [shape = 'u8[8192]{0}', space=vmem, size = 0x2000, scoped, tag = 'input window, operand 0, single buffered']
    #allocation3 [shape = 's32[1]{0}', space=sflag, size = 0x4, scoped, tag = 'scoped memory for tpu_custom_call.1']
    #allocation4 [shape = 's32[1]{0}', space=sflag, size = 0x4, scoped, tag = 'scoped memory for tpu_custom_call.1']
    #allocation5 [shape = 'u8[8192]{0}', space=vmem, size = 0x2000, scoped, tag = 'output window, operand 0, single buffered']
    %6 = vsyncpa [#allocation3], 0
    %7 = vsyncpa [#allocation4], 0
    // Predicated region
    $region2: #{tpu_custom_call.1} parent=1 // pred_check
      _
    $region3: #{tpu_custom_call.1} parent=1 // pred_check_branch
      %9 = sbr.rel (0) target = $region5
    $region4: #{tpu_custom_call.1} parent=1 // pred_region
      %s11 = ssub.s32 256, 256
      %12 = vsyncadd [#allocation3], %s11
      %s14 = sshll.u32 [#allocation2], 4
      %s15 = int_to_ptr.vmem [resolvable:$true] %s14
      %17 = dma.hbm_to_vmem [thread:$0]  %s0, 256, %s15, [#allocation3]
    $region5: #{tpu_custom_call.1} parent=1 // pred_fallthru
      _
    // Predicated region
    $region6: #{tpu_custom_call.1} parent=1 // pred_check
      _
    $region7: #{tpu_custom_call.1} parent=1 // pred_check_branch
      %19 = sbr.rel (0) target = $region9
    $region8: #{tpu_custom_call.1} parent=1 // pred_region
      %20 = dma.done [#allocation3], 256
    $region9: #{tpu_custom_call.1} parent=1 // pred_fallthru
      _
    %v21 = vld [vmem:[#allocation2] sm:$0xff]
    %v22 = vld [vmem:[#allocation2 + $0x8] sm:$0xff]
    %23 = vst [vmem:[#allocation5] sm:$0xff] %v21
    %24 = vst [vmem:[#allocation5 + $0x8] sm:$0xff] %v22
    // Predicated region
    $region10: #{tpu_custom_call.1} parent=1 // pred_check
      _
    $region11: #{tpu_custom_call.1} parent=1 // pred_check_branch
      %26 = sbr.rel (0) target = $region13
    $region12: #{tpu_custom_call.1} parent=1 // pred_region
      %s28 = ssub.s32 256, 256
      %29 = vsyncadd [#allocation4], %s28
      %s31 = sshll.u32 [#allocation5], 4
      %s32 = int_to_ptr.vmem [resolvable:$true] %s31
      %34 = dma.vmem_to_hbm [thread:$0]  %s32, 256, %s1, [#allocation4]
    $region13: #{tpu_custom_call.1} parent=1 // pred_fallthru
      _
    // Predicated region
    $region14: #{tpu_custom_call.1} parent=1 // pred_check
      _
    $region15: #{tpu_custom_call.1} parent=1 // pred_check_branch
      %36 = sbr.rel (0) target = $region17
    $region16: #{tpu_custom_call.1} parent=1 // pred_region
      %37 = dma.done [#allocation4], 256
    $region17: #{tpu_custom_call.1} parent=1 // pred_fallthru
      _
    %38 = vsyncpa [#allocation3], 1
    %39 = vsyncpa [#allocation4], 1

</llo_original>
